<compile_context>
chip_gen: v7x
topology: tpu7x:2x2x1
jax: 0.10.0
libtpu: 0.0.40
codegen_flags: <defaults>
</compile_context>

<pallas_src>
import functools

import numpy as np
import jax
import jax.numpy as jnp
from jax.experimental import pallas as pl
from jax.experimental.pallas import tpu as pltpu


# ---------------------------------------------------------------------------
# Host-side construction of the fused resize + center-crop interpolation matrices
# ---------------------------------------------------------------------------

def _resized_output_size(h, w, size):
    # torchvision F.resize with a single int: smaller edge -> size, aspect kept.
    short, long = (w, h) if w <= h else (h, w)
    new_short, new_long = size, int(size * long / short)
    if w <= h:
        return new_long, new_short   # (out_h, out_w)
    return new_short, new_long


def _bilinear_matrix(in_size, out_size):
    # PyTorch bilinear interpolation weights (align_corners=False, antialias=False).
    scale = in_size / out_size
    i = np.arange(out_size, dtype=np.float64)
    src = np.maximum((i + 0.5) * scale - 0.5, 0.0)
    i0 = np.floor(src).astype(np.int64)
    lam = (src - i0).astype(np.float32)
    i1 = np.minimum(i0 + 1, in_size - 1)
    m = np.zeros((out_size, in_size), dtype=np.float32)
    m[np.arange(out_size), i0] += 1.0 - lam
    m[np.arange(out_size), i1] += lam
    return m


def _center_crop_rows(m, out_len, crop_len):
    # Select the centered crop window of rows from the (out_len, in_len) bilinear matrix.
    # Rows that fall outside the resized image become zero rows, matching torchvision's
    # center_crop zero-padding when crop_size > resized size.
    if crop_len > out_len:
        top = -((crop_len - out_len) // 2)
    else:
        top = int(round((out_len - crop_len) / 2.0))
    rows = np.zeros((crop_len, m.shape[1]), dtype=np.float32)
    src = top + np.arange(crop_len)
    valid = (src >= 0) & (src < out_len)
    rows[valid] = m[src[valid]]
    return rows


def _make_resize_crop_matrices(H, W, resize_size, crop_size):
    oh, ow = _resized_output_size(H, W, resize_size)
    rh = _center_crop_rows(_bilinear_matrix(H, oh), oh, crop_size)   # (crop, H)
    rw = _center_crop_rows(_bilinear_matrix(W, ow), ow, crop_size)   # (crop, W)
    return rh, np.ascontiguousarray(rw.T)                            # (crop, H), (W, crop)


# ---------------------------------------------------------------------------
# Kernel
# ---------------------------------------------------------------------------

def _preproc_kernel(mean_ref, istd_ref, rh_ref, rwt_ref, x_ref, o_ref,
                    *, C, width_first, compute_dtype):
    # mean_ref / istd_ref : SMEM (C,) f32, already folded with the 1/max_val rescale.
    # rh_ref  : (ch, H)   resize+crop matrix along height   (already compute_dtype)
    # rwt_ref : (W, cw)   resize+crop matrix along width^T  (already compute_dtype)
    # x_ref   : (1, C, H, W) one image (original input dtype, e.g. uint8)
    # o_ref   : (1, C, ch, cw)
    rh = rh_ref[...]
    rwt = rwt_ref[...]

    for c in range(C):                                   # static, tiny (C == 3)
        # Leading-dim indexing: no sublane-misaligned slicing, no relayout copies.
        plane = x_ref[0, c].astype(jnp.float32).astype(compute_dtype)   # (H, W)
        if width_first:
            # Contract W first (W >= H): smaller intermediate / fewer FLOPs.
            t = jnp.dot(plane, rwt, preferred_element_type=jnp.float32)        # (H, cw)
            out = jnp.dot(rh, t.astype(compute_dtype),
                          preferred_element_type=jnp.float32)                  # (ch, cw)
        else:
            # Contract H first (H > W).
            t = jnp.dot(rh, plane, preferred_element_type=jnp.float32)         # (ch, W)
            out = jnp.dot(t.astype(compute_dtype), rwt,
                          preferred_element_type=jnp.float32)                  # (ch, cw)
        o_ref[0, c] = ((out - mean_ref[c]) * istd_ref[c]).astype(o_ref.dtype)


# ---------------------------------------------------------------------------
# Wrapper
# ---------------------------------------------------------------------------

def image_classification_preprocess(img, *, crop_size, resize_size=256,
                                    mean=(0.485, 0.456, 0.406),
                                    std=(0.229, 0.224, 0.225),
                                    out_dtype=jnp.float32,
                                    compute_dtype=jnp.bfloat16):
    squeeze = False
    if img.ndim == 3:                      # single (C, H, W) image
        img = img[None]
        squeeze = True
    B, C, H, W = img.shape
    ch = cw = int(crop_size)

    rh, rwt = _make_resize_crop_matrices(H, W, int(resize_size), int(crop_size))
    rh_j = jnp.asarray(rh).astype(compute_dtype)     # ship weights in the MXU dtype
    rwt_j = jnp.asarray(rwt).astype(compute_dtype)

    # convert_image_dtype: integer inputs are rescaled by 1/max_val, float inputs are
    # identity.  Fold that rescale into the normalization constants so the image can be
    # DMA'd into the kernel in its original (e.g. uint8) dtype.
    if jnp.issubdtype(img.dtype, jnp.integer):
        max_val = float(jnp.iinfo(img.dtype).max)
    else:
        max_val = 1.0
    mean_arr = jnp.asarray(mean, jnp.float32) * max_val
    istd_arr = (1.0 / jnp.asarray(std, jnp.float32)) / max_val

    width_first = W >= H

    kernel = functools.partial(
        _preproc_kernel, C=C, width_first=width_first, compute_dtype=compute_dtype)

    out = pl.pallas_call(
        kernel,
        out_shape=jax.ShapeDtypeStruct((B, C, ch, cw), out_dtype),
        grid=(B,),
        in_specs=[
            pl.BlockSpec(memory_space=pltpu.MemorySpace.SMEM),      # mean * max_val  (C,)
            pl.BlockSpec(memory_space=pltpu.MemorySpace.SMEM),      # (1/std)/max_val (C,)
            pl.BlockSpec((ch, H), lambda b: (0, 0)),                # Rh    (ch, H)
            pl.BlockSpec((W, cw), lambda b: (0, 0)),                # Rw^T  (W, cw)
            pl.BlockSpec((1, C, H, W), lambda b: (b, 0, 0, 0)),     # one image, orig dtype
        ],
        out_specs=pl.BlockSpec((1, C, ch, cw), lambda b: (b, 0, 0, 0)),
        compiler_params=pltpu.CompilerParams(
            dimension_semantics=("parallel",)),
    )(mean_arr, istd_arr, rh_j, rwt_j, img)

    return out[0] if squeeze else out


# ---------------------------------------------------------------------------
# Self-test
# ---------------------------------------------------------------------------

if __name__ == "__main__":
    key = jax.random.PRNGKey(0)
    mean = (0.485, 0.456, 0.406)
    std = (0.229, 0.224, 0.225)
    mean_j = jnp.asarray(mean, jnp.float32)
    istd_j = 1.0 / jnp.asarray(std, jnp.float32)

    def reference(x_float, H, W, resize_size, crop_size):
        rh, rwt = _make_resize_crop_matrices(H, W, resize_size, crop_size)
        r = jnp.einsum('ij,bcjk,kl->bcil', jnp.asarray(rh), x_float, jnp.asarray(rwt))
        return (r - mean_j[None, :, None, None]) * istd_j[None, :, None, None]

    crop_size, resize_size = 8, 16

    # 1) float32 landscape input (W > H), f32 compute path: exactness check.
    B, C, H, W = 2, 3, 32, 48
    k1, k2 = jax.random.split(key)
    xf = jax.random.uniform(k1, (B, C, H, W), dtype=jnp.float32)
    out_f32 = jax.block_until_ready(
        image_classification_preprocess(
            xf, crop_size=crop_size, resize_size=resize_size, mean=mean, std=std,
            compute_dtype=jnp.float32))
    ref = reference(xf, H, W, resize_size, crop_size)
    assert out_f32.shape == (B, C, crop_size, crop_size), out_f32.shape
    np.testing.assert_allclose(np.asarray(out_f32), np.asarray(ref), rtol=1e-5, atol=1e-5)

    # 2) float32 landscape input, default bf16 MXU path (looser tolerance).
    out_bf = jax.block_until_ready(
        image_classification_preprocess(
            xf, crop_size=crop_size, resize_size=resize_size, mean=mean, std=std))
    np.testing.assert_allclose(np.asarray(out_bf), np.asarray(ref), rtol=0, atol=6e-2)

    # 3) uint8 portrait input (H > W): uint8 DMA'd into the kernel, in-kernel convert,
    #    1/255 folded into normalization, height-first matmul order, bf16 MXU.
    B, C, H, W = 2, 3, 48, 32
    xu8 = jax.random.randint(k2, (B, C, H, W), 0, 256, dtype=jnp.int32).astype(jnp.uint8)
    out8 = jax.block_until_ready(
        image_classification_preprocess(
            xu8, crop_size=crop_size, resize_size=resize_size, mean=mean, std=std))
    ref8 = reference(xu8.astype(jnp.float32) / 255.0, H, W, resize_size, crop_size)
    assert out8.shape == (B, C, crop_size, crop_size), out8.shape
    np.testing.assert_allclose(np.asarray(out8), np.asarray(ref8), rtol=0, atol=6e-2)

    # 4) single (C, H, W) image path.
    out1 = jax.block_until_ready(
        image_classification_preprocess(
            xu8[0], crop_size=crop_size, resize_size=resize_size, mean=mean, std=std))
    assert out1.shape == (C, crop_size, crop_size), out1.shape
    np.testing.assert_allclose(np.asarray(out1), np.asarray(ref8[0]), rtol=0, atol=6e-2)

    print("KERNEL_OK")
</pallas_src>

<mosaic_0001>
module attributes {stable_mosaic.version = 11 : i64} {
  func.func @_preproc_kernel(%arg0: i32, %arg1: memref<3xf32, #tpu.memory_space<smem>>, %arg2: memref<3xf32, #tpu.memory_space<smem>>, %arg3: memref<8x32xf32, #tpu.memory_space<vmem>>, %arg4: memref<48x8xf32, #tpu.memory_space<vmem>>, %arg5: memref<1x3x32x48xf32, #tpu.memory_space<vmem>>, %arg6: memref<1x3x8x8xf32, #tpu.memory_space<vmem>>) attributes {dimension_semantics = [#tpu.dimension_semantics<parallel>], iteration_bounds = array<i64: 2>, scalar_prefetch = 0 : i64, scratch_operands = 0 : i64, tpu.core_type = #tpu.core_type<tc>, window_params = [{transform_indices = @transform_0, window_bounds = array<i64: 3>}, {transform_indices = @transform_1, window_bounds = array<i64: 3>}, {pipeline_mode = #tpu.pipeline_mode<synchronous>, transform_indices = @transform_2, window_bounds = array<i64: 8, 32>}, {pipeline_mode = #tpu.pipeline_mode<synchronous>, transform_indices = @transform_3, window_bounds = array<i64: 48, 8>}, {transform_indices = @transform_4, window_bounds = array<i64: 1, 3, 32, 48>}, {transform_indices = @transform_5, window_bounds = array<i64: 1, 3, 8, 8>}]} {
    %c0 = arith.constant 0 : index
    %c0_0 = arith.constant 0 : index
    %0 = vector.load %arg3[%c0, %c0_0] : memref<8x32xf32, #tpu.memory_space<vmem>>, vector<8x32xf32>
    %c0_1 = arith.constant 0 : index
    %c0_2 = arith.constant 0 : index
    %1 = vector.load %arg4[%c0_1, %c0_2] : memref<48x8xf32, #tpu.memory_space<vmem>>, vector<48x8xf32>
    %c0_3 = arith.constant 0 : index
    %c0_4 = arith.constant 0 : index
    %c0_5 = arith.constant 0 : index
    %c0_6 = arith.constant 0 : index
    %2 = vector.load %arg5[%c0_3, %c0_4, %c0_5, %c0_6] : memref<1x3x32x48xf32, #tpu.memory_space<vmem>>, vector<1x1x32x48xf32>
    %3 = vector.shape_cast %2 : vector<1x1x32x48xf32> to vector<32x48xf32>
    %cst = arith.constant dense<0.000000e+00> : vector<32x8xf32>
    %4 = tpu.matmul %3, %1, %cst {dimension_numbers = #tpu.dot_dimension_numbers<[1], [0], [0], [1], [0, 0, 1, 1], [], []>} : vector<32x48xf32>, vector<48x8xf32>, vector<32x8xf32> -> vector<32x8xf32>
    %cst_7 = arith.constant dense<0.000000e+00> : vector<8x8xf32>
    %5 = tpu.matmul %0, %4, %cst_7 {dimension_numbers = #tpu.dot_dimension_numbers<[1], [0], [0], [1], [0, 0, 1, 1], [], []>} : vector<8x32xf32>, vector<32x8xf32>, vector<8x8xf32> -> vector<8x8xf32>
    %c0_8 = arith.constant 0 : index
    %6 = memref.load %arg1[%c0_8] : memref<3xf32, #tpu.memory_space<smem>>
    %7 = vector.broadcast %6 : f32 to vector<8x8xf32>
    %8 = arith.subf %5, %7 : vector<8x8xf32>
    %c0_9 = arith.constant 0 : index
    %9 = memref.load %arg2[%c0_9] : memref<3xf32, #tpu.memory_space<smem>>
    %10 = vector.broadcast %9 : f32 to vector<8x8xf32>
    %11 = arith.mulf %8, %10 : vector<8x8xf32>
    %c0_10 = arith.constant 0 : index
    %c0_11 = arith.constant 0 : index
    %c0_12 = arith.constant 0 : index
    %c0_13 = arith.constant 0 : index
    %12 = vector.load %arg6[%c0_10, %c0_11, %c0_12, %c0_13] : memref<1x3x8x8xf32, #tpu.memory_space<vmem>>, vector<1x1x8x8xf32>
    %13 = vector.shape_cast %12 : vector<1x1x8x8xf32> to vector<8x8xf32>
    %14 = vector.shape_cast %11 : vector<8x8xf32> to vector<1x1x8x8xf32>
    tpu.vector_store %arg6[%c0_10, %c0_11, %c0_12, %c0_13], %14 {strides = array<i32>} : memref<1x3x8x8xf32, #tpu.memory_space<vmem>>, vector<1x1x8x8xf32>,
    %c0_14 = arith.constant 0 : index
    %c1 = arith.constant 1 : index
    %c0_15 = arith.constant 0 : index
    %c0_16 = arith.constant 0 : index
    %15 = vector.load %arg5[%c0_14, %c1, %c0_15, %c0_16] : memref<1x3x32x48xf32, #tpu.memory_space<vmem>>, vector<1x1x32x48xf32>
    %16 = vector.shape_cast %15 : vector<1x1x32x48xf32> to vector<32x48xf32>
    %cst_17 = arith.constant dense<0.000000e+00> : vector<32x8xf32>
    %17 = tpu.matmul %16, %1, %cst_17 {dimension_numbers = #tpu.dot_dimension_numbers<[1], [0], [0], [1], [0, 0, 1, 1], [], []>} : vector<32x48xf32>, vector<48x8xf32>, vector<32x8xf32> -> vector<32x8xf32>
    %cst_18 = arith.constant dense<0.000000e+00> : vector<8x8xf32>
    %18 = tpu.matmul %0, %17, %cst_18 {dimension_numbers = #tpu.dot_dimension_numbers<[1], [0], [0], [1], [0, 0, 1, 1], [], []>} : vector<8x32xf32>, vector<32x8xf32>, vector<8x8xf32> -> vector<8x8xf32>
    %c1_19 = arith.constant 1 : index
    %19 = memref.load %arg1[%c1_19] : memref<3xf32, #tpu.memory_space<smem>>
    %20 = vector.broadcast %19 : f32 to vector<8x8xf32>
    %21 = arith.subf %18, %20 : vector<8x8xf32>
    %c1_20 = arith.constant 1 : index
    %22 = memref.load %arg2[%c1_20] : memref<3xf32, #tpu.memory_space<smem>>
    %23 = vector.broadcast %22 : f32 to vector<8x8xf32>
    %24 = arith.mulf %21, %23 : vector<8x8xf32>
    %c0_21 = arith.constant 0 : index
    %c1_22 = arith.constant 1 : index
    %c0_23 = arith.constant 0 : index
    %c0_24 = arith.constant 0 : index
    %25 = vector.load %arg6[%c0_21, %c1_22, %c0_23, %c0_24] : memref<1x3x8x8xf32, #tpu.memory_space<vmem>>, vector<1x1x8x8xf32>
    %26 = vector.shape_cast %25 : vector<1x1x8x8xf32> to vector<8x8xf32>
    %27 = vector.shape_cast %24 : vector<8x8xf32> to vector<1x1x8x8xf32>
    tpu.vector_store %arg6[%c0_21, %c1_22, %c0_23, %c0_24], %27 {strides = array<i32>} : memref<1x3x8x8xf32, #tpu.memory_space<vmem>>, vector<1x1x8x8xf32>,
    %c0_25 = arith.constant 0 : index
    %c2 = arith.constant 2 : index
    %c0_26 = arith.constant 0 : index
    %c0_27 = arith.constant 0 : index
    %28 = vector.load %arg5[%c0_25, %c2, %c0_26, %c0_27] : memref<1x3x32x48xf32, #tpu.memory_space<vmem>>, vector<1x1x32x48xf32>
    %29 = vector.shape_cast %28 : vector<1x1x32x48xf32> to vector<32x48xf32>
    %cst_28 = arith.constant dense<0.000000e+00> : vector<32x8xf32>
    %30 = tpu.matmul %29, %1, %cst_28 {dimension_numbers = #tpu.dot_dimension_numbers<[1], [0], [0], [1], [0, 0, 1, 1], [], []>} : vector<32x48xf32>, vector<48x8xf32>, vector<32x8xf32> -> vector<32x8xf32>
    %cst_29 = arith.constant dense<0.000000e+00> : vector<8x8xf32>
    %31 = tpu.matmul %0, %30, %cst_29 {dimension_numbers = #tpu.dot_dimension_numbers<[1], [0], [0], [1], [0, 0, 1, 1], [], []>} : vector<8x32xf32>, vector<32x8xf32>, vector<8x8xf32> -> vector<8x8xf32>
    %c2_30 = arith.constant 2 : index
    %32 = memref.load %arg1[%c2_30] : memref<3xf32, #tpu.memory_space<smem>>
    %33 = vector.broadcast %32 : f32 to vector<8x8xf32>
    %34 = arith.subf %31, %33 : vector<8x8xf32>
    %c2_31 = arith.constant 2 : index
    %35 = memref.load %arg2[%c2_31] : memref<3xf32, #tpu.memory_space<smem>>
    %36 = vector.broadcast %35 : f32 to vector<8x8xf32>
    %37 = arith.mulf %34, %36 : vector<8x8xf32>
    %c0_32 = arith.constant 0 : index
    %c2_33 = arith.constant 2 : index
    %c0_34 = arith.constant 0 : index
    %c0_35 = arith.constant 0 : index
    %38 = vector.load %arg6[%c0_32, %c2_33, %c0_34, %c0_35] : memref<1x3x8x8xf32, #tpu.memory_space<vmem>>, vector<1x1x8x8xf32>
    %39 = vector.shape_cast %38 : vector<1x1x8x8xf32> to vector<8x8xf32>
    %40 = vector.shape_cast %37 : vector<8x8xf32> to vector<1x1x8x8xf32>
    tpu.vector_store %arg6[%c0_32, %c2_33, %c0_34, %c0_35], %40 {strides = array<i32>} : memref<1x3x8x8xf32, #tpu.memory_space<vmem>>, vector<1x1x8x8xf32>,
    return
  }
  func.func @transform_0(%arg0: i32) -> i32 {
    %c0_i32 = arith.constant 0 : i32
    %c0_i32_0 = arith.constant 0 : i32
    return %c0_i32 : i32
  }
  func.func @transform_1(%arg0: i32) -> i32 {
    %c0_i32 = arith.constant 0 : i32
    %c0_i32_0 = arith.constant 0 : i32
    return %c0_i32 : i32
  }
  func.func @transform_2(%arg0: i32) -> (i32, i32) {
    %c0_i32 = arith.constant 0 : i32
    %c0_i32_0 = arith.constant 0 : i32
    %c0_i32_1 = arith.constant 0 : i32
    return %c0_i32, %c0_i32_0 : i32, i32
  }
  func.func @transform_3(%arg0: i32) -> (i32, i32) {
    %c0_i32 = arith.constant 0 : i32
    %c0_i32_0 = arith.constant 0 : i32
    %c0_i32_1 = arith.constant 0 : i32
    return %c0_i32, %c0_i32_0 : i32, i32
  }
  func.func @transform_4(%arg0: i32) -> (i32, i32, i32, i32) {
    %c0_i32 = arith.constant 0 : i32
    %c0_i32_0 = arith.constant 0 : i32
    %c0_i32_1 = arith.constant 0 : i32
    %c0_i32_2 = arith.constant 0 : i32
    return %arg0, %c0_i32, %c0_i32_0, %c0_i32_1 : i32, i32, i32, i32
  }
  func.func @transform_5(%arg0: i32) -> (i32, i32, i32, i32) {
    %c0_i32 = arith.constant 0 : i32
    %c0_i32_0 = arith.constant 0 : i32
    %c0_i32_1 = arith.constant 0 : i32
    %c0_i32_2 = arith.constant 0 : i32
    return %arg0, %c0_i32, %c0_i32_0, %c0_i32_1 : i32, i32, i32, i32
  }
}

</mosaic_0001>

<llo_original>
// kernel: tpu_custom_call.1
$region0: #{tpu_custom_call.1}
  #allocation0 [shape = 'u32[]', space=smem, size = 0x4, offset = 0x4, fixed_abs, tag = 'smem constant byte address 0x4 - core index']
  #allocation1 [shape = 'u32[144,128]{1,0:T(1,128)}', space=vmem, size = 0x12000, scoped, tag = 'internal scratch']
  %s0 = inlined_call_operand.vmem [shape: f32[3], index: 0, kind: input, shape index: {}]
  %s1 = inlined_call_operand.vmem [shape: f32[3], index: 1, kind: input, shape index: {}]
  %s2 = inlined_call_operand.vmem [shape: f32[8,32], index: 2, kind: input, shape index: {}]
  %s3 = inlined_call_operand.vmem [shape: f32[48,8], index: 3, kind: input, shape index: {}]
  %s4 = inlined_call_operand.hbm [shape: f32[2,3,32,48], index: 4, kind: input, shape index: {}]
  %s5 = inlined_call_operand.hbm [shape: f32[2,3,8,8], index: 5, kind: output, shape index: {}]
  %s6 = sld [smem:[#allocation0]]
  $region65: #{tpu_custom_call.1} parent=0
    _
  %s8 = ssub.s32 1, %s6
  %s9 = scalar_select 0, %s8, %s6
  $region1: #{tpu_custom_call.1} parent=0
    #allocation2 [shape = 'u8[512]{0}', space=smem, size = 0x200, scoped, tag = 'input window, operand 0, single buffered']
    #allocation3 [shape = 's32[2]{0}', space=sflag, size = 0x8, scoped, tag = 'scoped memory for tpu_custom_call.1']
    #allocation4 [shape = 's32[2]{0}', space=sflag, size = 0x8, scoped, tag = 'scoped memory for tpu_custom_call.1']
    #allocation5 [shape = 's32[2]{0}', space=sflag, size = 0x8, scoped, tag = 'scoped memory for tpu_custom_call.1']
    #allocation6 [shape = 'u8[512]{0}', space=smem, size = 0x200, scoped, tag = 'input window, operand 1, single buffered']
    #allocation7 [shape = 's32[1]{0}', space=sflag, size = 0x4, scoped, tag = 'scoped memory for tpu_custom_call.1']
    #allocation8 [shape = 'u8[98304]{0}', space=vmem, size = 0x18000, scoped, tag = 'input window, operand 4']
    #allocation9 [shape = 'u8[24576]{0}', space=vmem, size = 0x6000, scoped, tag = 'output window, operand 0']
    %10 = vsyncpa [#allocation5], 0
    %11 = vsyncpa [#allocation7], 0
    %12 = vsyncpa [#allocation3], 0
    %s13 = scalar_lea.sflag [#allocation3], 1
    %14 = vsyncpa %s13, 0
    %15 = vsyncpa [#allocation4], 0
    %s16 = scalar_lea.sflag [#allocation4], 1
    %17 = vsyncpa %s16, 0
    loop: start=0, step=1, limit=4
    $region2: #{tpu_custom_call.1} parent=1 // loop_pre_header
      _
    $region3: #{tpu_custom_call.1} parent=1 // loop_header
      %s19 = sphi 0, %s23
      %p20 = scmp.ge.s32.totalorder %s19, 4
      %s27 = sphi 0, %s27
      %s29 = sphi 0, %s27
      %s30 = sphi 0, %s29
      %s44 = sphi 0, %s30
      %s48 = sphi 0, %s48
      %s50 = sphi 0, %s48
      %s51 = sphi 0, %s50
      %s65 = sphi 0, %s51
      %s69 = sphi 0, %s69
      %s71 = sphi 0, %s69
      %s72 = sphi 0, %s71
      %s86 = sphi 0, %s72
      %s90 = sphi 0, %s90
      %s92 = sphi 0, %s90
      %s93 = sphi 0, %s92
      %s107 = sphi 0, %s93
      %s113 = sphi 0, %s115
      %s116 = sphi 0, %s113
      %s117 = sphi 0, %s116
      %s133 = sphi 0, %s117
      %s139 = sphi 0, %s141
      %s142 = sphi 0, %s139
      %s143 = sphi 0, %s142
      %s159 = sphi 0, %s143
    $region4: #{tpu_custom_call.1} parent=1 // loop_header_branch
      %22 = sbr.rel (%p20) target = $region8
    $region5: #{tpu_custom_call.1} parent=1 // loop_body
      %s24 = ssub.s32 %s19, 1
      %s25 = ssub.s32 %s19, 2
      %s26 = sadd.s32 %s19, 1
      %s28 = sadd.s32 %s27, 1
      %p31 = scmp.eq.s32.totalorder %s19, 1
      %p32 = scmp.ne.s32.totalorder %s27, %s29
      %p33 = scmp.eq.s32.totalorder %s19, 0
      %p34 = por %p32, %p33
      %p35 = scmp.ne.s32.totalorder %s27, %s29
      %p36 = scmp.eq.s32.totalorder %s24, 1
      %p37 = por %p35, %p36
      %p38 = scmp.ne.s32.totalorder %s29, %s30
      %p39 = scmp.eq.s32.totalorder %s24, 0
      %p40 = por %p38, %p39
      %p41 = scmp.ne.s32.totalorder %s29, %s30
      %p42 = scmp.eq.s32.totalorder %s25, 1
      %p43 = por %p41, %p42
      %p45 = scmp.ne.s32.totalorder %s30, %s44
      %p46 = scmp.eq.s32.totalorder %s25, 0
      %p47 = por %p45, %p46
      %s49 = sadd.s32 %s48, 1
      %p52 = scmp.eq.s32.totalorder %s19, 1
      %p53 = scmp.ne.s32.totalorder %s48, %s50
      %p54 = scmp.eq.s32.totalorder %s19, 0
      %p55 = por %p53, %p54
      %p56 = scmp.ne.s32.totalorder %s48, %s50
      %p57 = scmp.eq.s32.totalorder %s24, 1
      %p58 = por %p56, %p57
      %p59 = scmp.ne.s32.totalorder %s50, %s51
      %p60 = scmp.eq.s32.totalorder %s24, 0
      %p61 = por %p59, %p60
      %p62 = scmp.ne.s32.totalorder %s50, %s51
      %p63 = scmp.eq.s32.totalorder %s25, 1
      %p64 = por %p62, %p63
      %p66 = scmp.ne.s32.totalorder %s51, %s65
      %p67 = scmp.eq.s32.totalorder %s25, 0
      %p68 = por %p66, %p67
      %s70 = sadd.s32 %s69, 1
      %p73 = scmp.eq.s32.totalorder %s19, 1
      %p74 = scmp.ne.s32.totalorder %s69, %s71
      %p75 = scmp.eq.s32.totalorder %s19, 0
      %p76 = por %p74, %p75
      %p77 = scmp.ne.s32.totalorder %s69, %s71
      %p78 = scmp.eq.s32.totalorder %s24, 1
      %p79 = por %p77, %p78
      %p80 = scmp.ne.s32.totalorder %s71, %s72
      %p81 = scmp.eq.s32.totalorder %s24, 0
      %p82 = por %p80, %p81
      %p83 = scmp.ne.s32.totalorder %s71, %s72
      %p84 = scmp.eq.s32.totalorder %s25, 1
      %p85 = por %p83, %p84
      %p87 = scmp.ne.s32.totalorder %s72, %s86
      %p88 = scmp.eq.s32.totalorder %s25, 0
      %p89 = por %p87, %p88
      %s91 = sadd.s32 %s90, 1
      %p94 = scmp.eq.s32.totalorder %s19, 1
      %p95 = scmp.ne.s32.totalorder %s90, %s92
      %p96 = scmp.eq.s32.totalorder %s19, 0
      %p97 = por %p95, %p96
      %p98 = scmp.ne.s32.totalorder %s90, %s92
      %p99 = scmp.eq.s32.totalorder %s24, 1
      %p100 = por %p98, %p99
      %p101 = scmp.ne.s32.totalorder %s92, %s93
      %p102 = scmp.eq.s32.totalorder %s24, 0
      %p103 = por %p101, %p102
      %p104 = scmp.ne.s32.totalorder %s92, %s93
      %p105 = scmp.eq.s32.totalorder %s25, 1
      %p106 = por %p104, %p105
      %p108 = scmp.ne.s32.totalorder %s93, %s107
      %p109 = scmp.eq.s32.totalorder %s25, 0
      %p110 = por %p108, %p109
      %s111 = ssub.s32 %s19, %s26
      %p112 = scmp.eq.s32.totalorder %s111, 0
      %s114 = sadd.s32 %s113, 1
      %s115 = scalar_select %p112, %s113, %s114
      %p118 = pneg %p112
      %p119 = scmp.eq.s32.totalorder %s19, 1
      %p120 = por %p118, %p119
      %p121 = scmp.ne.s32.totalorder %s113, %s116
      %p122 = scmp.eq.s32.totalorder %s19, 0
      %p123 = por %p121, %p122
      %p124 = scmp.ne.s32.totalorder %s113, %s116
      %p125 = scmp.eq.s32.totalorder %s24, 1
      %p126 = por %p124, %p125
      %p127 = scmp.ne.s32.totalorder %s116, %s117
      %p128 = scmp.eq.s32.totalorder %s24, 0
      %p129 = por %p127, %p128
      %p130 = scmp.ne.s32.totalorder %s116, %s117
      %p131 = scmp.eq.s32.totalorder %s25, 1
      %p132 = por %p130, %p131
      %p134 = scmp.ne.s32.totalorder %s117, %s133
      %p135 = scmp.eq.s32.totalorder %s25, 0
      %p136 = por %p134, %p135
      %s137 = ssub.s32 %s19, %s26
      %p138 = scmp.eq.s32.totalorder %s137, 0
      %s140 = sadd.s32 %s139, 1
      %s141 = scalar_select %p138, %s139, %s140
      %p144 = pneg %p138
      %p145 = scmp.eq.s32.totalorder %s19, 1
      %p146 = por %p144, %p145
      %p147 = scmp.ne.s32.totalorder %s139, %s142
      %p148 = scmp.eq.s32.totalorder %s19, 0
      %p149 = por %p147, %p148
      %p150 = scmp.ne.s32.totalorder %s139, %s142
      %p151 = scmp.eq.s32.totalorder %s24, 1
      %p152 = por %p150, %p151
      %p153 = scmp.ne.s32.totalorder %s142, %s143
      %p154 = scmp.eq.s32.totalorder %s24, 0
      %p155 = por %p153, %p154
      %p156 = scmp.ne.s32.totalorder %s142, %s143
      %p157 = scmp.eq.s32.totalorder %s25, 1
      %p158 = por %p156, %p157
      %p160 = scmp.ne.s32.totalorder %s143, %s159
      %p161 = scmp.eq.s32.totalorder %s25, 0
      %p162 = por %p160, %p161
      %p163 = scmp.le.s32.totalorder 1, %s19
      %p164 = scmp.lt.s32.totalorder %s19, 3
      %p165 = pnand %p163, %p164
      %p166 = pneg %p165
      // Predicated region
      $region9: #{tpu_custom_call.1} parent=5 // pred_check
        _
      $region10: #{tpu_custom_call.1} parent=5 // pred_check_branch
        %168 = sbr.rel (%p165) target = $region12
      $region11: #{tpu_custom_call.1} parent=5 // pred_region
        %s169 = ssub.s32 %s19, 1
        // Predicated region
        $region13: #{tpu_custom_call.1} parent=11 // pred_check
          %p170 = pneg %p40
        $region14: #{tpu_custom_call.1} parent=11 // pred_check_branch
          %172 = sbr.rel (%p170) target = $region16
        $region15: #{tpu_custom_call.1} parent=11 // pred_region
          %s174 = ssub.s32 16, 16
          %175 = vsyncadd [#allocation5], %s174
          %s177 = sshll.u32 %s0, 4
          %s178 = int_to_ptr.vmem [resolvable:$true] %s177
          %180 = dma.vmem_to_smem %s178, 16, [#allocation2], [#allocation5]
        $region16: #{tpu_custom_call.1} parent=11 // pred_fallthru
          _
        // Predicated region
        $region17: #{tpu_custom_call.1} parent=11 // pred_check
          %p181 = pneg %p61
        $region18: #{tpu_custom_call.1} parent=11 // pred_check_branch
          %183 = sbr.rel (%p181) target = $region20
        $region19: #{tpu_custom_call.1} parent=11 // pred_region
          %s185 = ssub.s32 16, 16
          %186 = vsyncadd [#allocation7], %s185
          %s188 = sshll.u32 %s1, 4
          %s189 = int_to_ptr.vmem [resolvable:$true] %s188
          %191 = dma.vmem_to_smem %s189, 16, [#allocation6], [#allocation7]
        $region20: #{tpu_custom_call.1} parent=11 // pred_fallthru
          _
        // Predicated region
        $region21: #{tpu_custom_call.1} parent=11 // pred_check
          %p192 = pneg %p82
        $region22: #{tpu_custom_call.1} parent=11 // pred_check_branch
          %194 = sbr.rel (%p192) target = $region24
        $region23: #{tpu_custom_call.1} parent=11 // pred_region
          _
        $region24: #{tpu_custom_call.1} parent=11 // pred_fallthru
          _
        // Predicated region
        $region25: #{tpu_custom_call.1} parent=11 // pred_check
          %p195 = pneg %p103
        $region26: #{tpu_custom_call.1} parent=11 // pred_check_branch
          %197 = sbr.rel (%p195) target = $region28
        $region27: #{tpu_custom_call.1} parent=11 // pred_region
          _
        $region28: #{tpu_custom_call.1} parent=11 // pred_fallthru
          _
      $region12: #{tpu_custom_call.1} parent=5 // pred_fallthru
        _
      %p198 = scmp.lt.s32.totalorder %s19, 2
      // Predicated region
      $region29: #{tpu_custom_call.1} parent=5 // pred_check
        %p199 = pneg %p198
      $region30: #{tpu_custom_call.1} parent=5 // pred_check_branch
        %201 = sbr.rel (%p199) target = $region32
      $region31: #{tpu_custom_call.1} parent=5 // pred_region
        // Predicated region
        $region33: #{tpu_custom_call.1} parent=31 // pred_check
          %p202 = pneg %p123
        $region34: #{tpu_custom_call.1} parent=31 // pred_check_branch
          %204 = sbr.rel (%p202) target = $region36
        $region35: #{tpu_custom_call.1} parent=31 // pred_region
          %s205 = sand.u32 %s113, 1
          %s206 = scalar_lea.sflag [#allocation3], %s205
          %s207 = sand.u32 %s113, 1
          %s208 = smul.addr %s207, 96
          %s209 = scalar_lea.vmem [#allocation8], %s208
          %s211 = ssub.s32 1536, 1536
          %212 = vsyncadd %s206, %s211
          %s213 = smul.addr %s19, 12
          %s214 = smul.addr %s213, 128
          %s215 = scalar_lea.hbm %s4, %s214
          %s216 = sshll.u32 %s209, 4
          %s217 = int_to_ptr.vmem [resolvable:$true] %s216
          %222 = dma.hbm_to_vmem [thread:$0]  %s215, 1536, %s217, %s206, 128, 128, 8
        $region36: #{tpu_custom_call.1} parent=31 // pred_fallthru
          _
      $region32: #{tpu_custom_call.1} parent=5 // pred_fallthru
        _
      %p223 = scmp.le.s32.totalorder 1, %s19
      %p224 = scmp.lt.s32.totalorder %s19, 3
      %p225 = pnand %p223, %p224
      %p226 = pneg %p225
      // Predicated region
      $region37: #{tpu_custom_call.1} parent=5 // pred_check
        _
      $region38: #{tpu_custom_call.1} parent=5 // pred_check_branch
        %228 = sbr.rel (%p225) target = $region40
      $region39: #{tpu_custom_call.1} parent=5 // pred_region
        %s229 = ssub.s32 %s19, 1
        // Predicated region
        $region41: #{tpu_custom_call.1} parent=39 // pred_check
          %p230 = pneg %p40
        $region42: #{tpu_custom_call.1} parent=39 // pred_check_branch
          %232 = sbr.rel (%p230) target = $region44
        $region43: #{tpu_custom_call.1} parent=39 // pred_region
          %233 = dma.done [#allocation5], 16
        $region44: #{tpu_custom_call.1} parent=39 // pred_fallthru
          _
        // Predicated region
        $region45: #{tpu_custom_call.1} parent=39 // pred_check
          %p234 = pneg %p61
        $region46: #{tpu_custom_call.1} parent=39 // pred_check_branch
          %236 = sbr.rel (%p234) target = $region48
        $region47: #{tpu_custom_call.1} parent=39 // pred_region
          %237 = dma.done [#allocation7], 16
        $region48: #{tpu_custom_call.1} parent=39 // pred_fallthru
          _
        %s238 = sand.u32 %s116, 1
        %s239 = scalar_lea.sflag [#allocation3], %s238
        %s240 = sand.u32 %s116, 1
        %s241 = smul.addr %s240, 96
        %s242 = scalar_lea.vmem [#allocation8], %s241
        // Predicated region
        $region49: #{tpu_custom_call.1} parent=39 // pred_check
          %p243 = pneg %p129
        $region50: #{tpu_custom_call.1} parent=39 // pred_check_branch
          %245 = sbr.rel (%p243) target = $region52
        $region51: #{tpu_custom_call.1} parent=39 // pred_region
          %246 = dma.done %s239, 1536
        $region52: #{tpu_custom_call.1} parent=39 // pred_fallthru
          _
        %247 = sfence
        %p248 = pneg %p40
        %p249 = pneg %p37
        %p250 = pneg %p61
        %p251 = pneg %p58
        %p252 = pneg %p82
        %p253 = pneg %p79
        %p254 = pneg %p103
        %p255 = pneg %p100
        %s256 = sand.u32 %s116, 1
        %s257 = scalar_lea.sflag [#allocation3], %s256
        %s258 = sand.u32 %s116, 1
        %s259 = smul.addr %s258, 96
        %s260 = scalar_lea.vmem [#allocation8], %s259
        %p261 = pneg %p129
        %p262 = pneg %p126
        %p263 = pneg %p155
        %p264 = pneg %p152
        %s265 = sand.u32 %s142, 1
        %s266 = scalar_lea.sflag [#allocation4], %s265
        %s267 = sand.u32 %s142, 1
        %s268 = smul.addr %s267, 24
        %s269 = scalar_lea.vmem [#allocation9], %s268
        %v270 = vld [vmem:[%s2] sm:$0xff]
        %v271 = vld [vmem:[%s3] sm:$0xff]
        %v272 = vld [vmem:[%s3 + $0x8] sm:$0xff]
        %v273 = vld [vmem:[%s3 + $0x10] sm:$0xff]
        %v274 = vld [vmem:[%s3 + $0x18] sm:$0xff]
        %v275 = vld [vmem:[%s3 + $0x20] sm:$0xff]
        %v276 = vld [vmem:[%s3 + $0x28] sm:$0xff]
        %v277 = vld [vmem:[%s242] sm:$0xff]
        %v278 = vld [vmem:[%s242 + $0x8] sm:$0xff]
        %v279 = vld [vmem:[%s242 + $0x10] sm:$0xff]
        %v280 = vld [vmem:[%s242 + $0x18] sm:$0xff]
        %vm281 = vcmask 392192
        %v283 = vsel %vm281, %v277, 0
        %v286 = vsel %vm281, %v278, 0
        %v289 = vsel %vm281, %v279, 0
        %v292 = vsel %vm281, %v280, 0
        %294 = vmatprep.subr.mxu0 0.0
        %295 = vmatpush1.msra.mxu0 %v271
        %296 = vmatprep.subr.mxu0 0.0
        %297 = vmatpush1.msra.mxu0 %v272
        %298 = vmatprep.subr.mxu0 0.0
        %299 = vmatpush1.msra.mxu0 %v273
        %300 = vmatprep.subr.mxu0 0.0
        %301 = vmatpush1.msra.mxu0 %v274
        %302 = vmatprep.subr.mxu0 0.0
        %303 = vmatpush1.msra.mxu0 %v275
        %304 = vmatprep.subr.mxu0 0.0
        %305 = vmatpush1.msra.mxu0 %v276
        %306 = vmatprep.subr.mxu0 0.0
        %307 = vmatpush1.msra.mxu0 0.0
        %308 = vmatprep.subr.mxu0 0.0
        %309 = vmatpush1.msra.mxu0 0.0
        %310 = vmatprep.subr.mxu0 0.0
        %311 = vmatpush1.msra.mxu0 0.0
        %312 = vmatprep.subr.mxu0 0.0
        %313 = vmatpush1.msra.mxu0 0.0
        %314 = vmatprep.subr.mxu0 0.0
        %315 = vmatpush1.msra.mxu0 0.0
        %316 = vmatprep.subr.mxu0 0.0
        %317 = vmatpush1.msra.mxu0 0.0
        %318 = vmatprep.subr.mxu0 0.0
        %319 = vmatpush1.msra.mxu0 0.0
        %320 = vmatprep.subr.mxu0 0.0
        %321 = vmatpush1.msra.mxu0 0.0
        %322 = vmatprep.subr.mxu0 0.0
        %323 = vmatpush1.msra.mxu0 0.0
        %324 = vmatprep.subr.mxu0 0.0
        %325 = vmatpush1.msra.mxu0 0.0
        %326 = vmatprep.subr.mxu0 0.0
        %327 = vmatpush1.msra.mxu0 0.0
        %328 = vmatprep.subr.mxu0 0.0
        %329 = vmatpush1.msra.mxu0 0.0
        %330 = vmatprep.subr.mxu0 0.0
        %331 = vmatpush1.msra.mxu0 0.0
        %332 = vmatprep.subr.mxu0 0.0
        %333 = vmatpush1.msra.mxu0 0.0
        %334 = vmatprep.subr.mxu0 0.0
        %335 = vmatpush1.msra.mxu0 0.0
        %336 = vmatprep.subr.mxu0 0.0
        %337 = vmatpush1.msra.mxu0 0.0
        %338 = vmatprep.subr.mxu0 0.0
        %339 = vmatpush1.msra.mxu0 0.0
        %340 = vmatprep.subr.mxu0 0.0
        %341 = vmatpush1.msra.mxu0 0.0
        %342 = vmatprep.subr.mxu0 0.0
        %343 = vmatpush1.msra.mxu0 0.0
        %344 = vmatprep.subr.mxu0 0.0
        %345 = vmatpush1.msra.mxu0 0.0
        %346 = vmatprep.subr.mxu0 0.0
        %347 = vmatpush1.msra.mxu0 0.0
        %348 = vmatprep.subr.mxu0 0.0
        %349 = vmatpush1.msra.mxu0 0.0
        %350 = vmatprep.subr.mxu0 0.0
        %351 = vmatpush1.msra.mxu0 0.0
        %352 = vmatprep.subr.mxu0 0.0
        %353 = vmatpush1.msra.mxu0 0.0
        %354 = vmatprep.subr.mxu0 0.0
        %355 = vmatpush1.msra.mxu0 0.0
        %356 = vmatprep.subr.mxu0 0.0
        %357 = vmatpush1.msra.mxu0 0.0
        %358 = vmatprep.mubr.f32.mxu0 0.0
        %359 = vmatmul.mubr.f32.gmra.mrb[0].mxu0 %v283
        %v360 = vpop.f32.mrb[0].mxu0
        %v361 = vadd.f32 0.0, %v360
        %v362 = vpop.f32.mrb[0].mxu0
        %363 = vmatprep.mubr.f32.mxu0 0.0
        %364 = vmatmul.mubr.f32.gmra.mrb[0].mxu0 %v286
        %v365 = vpop.f32.mrb[0].mxu0
        %v366 = vadd.f32 0.0, %v365
        %v367 = vpop.f32.mrb[0].mxu0
        %368 = vmatprep.mubr.f32.mxu0 0.0
        %369 = vmatmul.mubr.f32.gmra.mrb[0].mxu0 %v289
        %v370 = vpop.f32.mrb[0].mxu0
        %v371 = vadd.f32 0.0, %v370
        %v372 = vpop.f32.mrb[0].mxu0
        %373 = vmatprep.mubr.f32.mxu0 0.0
        %374 = vmatmul.mubr.f32.gmra.mrb[0].mxu0 %v292
        %v375 = vpop.f32.mrb[0].mxu0
        %v376 = vadd.f32 0.0, %v375
        %v377 = vpop.f32.mrb[0].mxu0
        %378 = vdwg.mxu0
        %vm379 = vcmask 261120
        %v381 = vsel %vm379, %v270, 0
        %383 = vmatprep.subr.mxu0 0.0
        %384 = vmatpush1.msra.mxu0 %v361
        %385 = vmatprep.subr.mxu0 0.0
        %386 = vmatpush1.msra.mxu0 %v366
        %387 = vmatprep.subr.mxu0 0.0
        %388 = vmatpush1.msra.mxu0 %v371
        %389 = vmatprep.subr.mxu0 0.0
        %390 = vmatpush1.msra.mxu0 %v376
        %391 = vmatprep.subr.mxu0 0.0
        %392 = vmatpush1.msra.mxu0 0.0
        %393 = vmatprep.subr.mxu0 0.0
        %394 = vmatpush1.msra.mxu0 0.0
        %395 = vmatprep.subr.mxu0 0.0
        %396 = vmatpush1.msra.mxu0 0.0
        %397 = vmatprep.subr.mxu0 0.0
        %398 = vmatpush1.msra.mxu0 0.0
        %399 = vmatprep.subr.mxu0 0.0
        %400 = vmatpush1.msra.mxu0 0.0
        %401 = vmatprep.subr.mxu0 0.0
        %402 = vmatpush1.msra.mxu0 0.0
        %403 = vmatprep.subr.mxu0 0.0
        %404 = vmatpush1.msra.mxu0 0.0
        %405 = vmatprep.subr.mxu0 0.0
        %406 = vmatpush1.msra.mxu0 0.0
        %407 = vmatprep.subr.mxu0 0.0
        %408 = vmatpush1.msra.mxu0 0.0
        %409 = vmatprep.subr.mxu0 0.0
        %410 = vmatpush1.msra.mxu0 0.0
        %411 = vmatprep.subr.mxu0 0.0
        %412 = vmatpush1.msra.mxu0 0.0
        %413 = vmatprep.subr.mxu0 0.0
        %414 = vmatpush1.msra.mxu0 0.0
        %415 = vmatprep.subr.mxu0 0.0
        %416 = vmatpush1.msra.mxu0 0.0
        %417 = vmatprep.subr.mxu0 0.0
        %418 = vmatpush1.msra.mxu0 0.0
        %419 = vmatprep.subr.mxu0 0.0
        %420 = vmatpush1.msra.mxu0 0.0
        %421 = vmatprep.subr.mxu0 0.0
        %422 = vmatpush1.msra.mxu0 0.0
        %423 = vmatprep.subr.mxu0 0.0
        %424 = vmatpush1.msra.mxu0 0.0
        %425 = vmatprep.subr.mxu0 0.0
        %426 = vmatpush1.msra.mxu0 0.0
        %427 = vmatprep.subr.mxu0 0.0
        %428 = vmatpush1.msra.mxu0 0.0
        %429 = vmatprep.subr.mxu0 0.0
        %430 = vmatpush1.msra.mxu0 0.0
        %431 = vmatprep.subr.mxu0 0.0
        %432 = vmatpush1.msra.mxu0 0.0
        %433 = vmatprep.subr.mxu0 0.0
        %434 = vmatpush1.msra.mxu0 0.0
        %435 = vmatprep.subr.mxu0 0.0
        %436 = vmatpush1.msra.mxu0 0.0
        %437 = vmatprep.subr.mxu0 0.0
        %438 = vmatpush1.msra.mxu0 0.0
        %439 = vmatprep.subr.mxu0 0.0
        %440 = vmatpush1.msra.mxu0 0.0
        %441 = vmatprep.subr.mxu0 0.0
        %442 = vmatpush1.msra.mxu0 0.0
        %443 = vmatprep.subr.mxu0 0.0
        %444 = vmatpush1.msra.mxu0 0.0
        %445 = vmatprep.subr.mxu0 0.0
        %446 = vmatpush1.msra.mxu0 0.0
        %447 = vmatprep.mubr.f32.mxu0 0.0
        %448 = vmatmul.mubr.f32.gmra.mrb[0].mxu0 %v381
        %v449 = vpop.f32.mrb[0].mxu0
        %v450 = vadd.f32 0.0, %v449
        %v451 = vpop.f32.mrb[0].mxu0
        %452 = vdwg.mxu0
        %s453 = sld [smem:[#allocation2]]
        %v454 = vstv %s453
        %v455 = vsub.f32 %v450, %v454
        %s456 = sld [smem:[#allocation6]]
        %v457 = vstv %s456
        %v458 = vmul.f32 %v455, %v457
        %vm459 = vcmask 64512
        %460 = vst.msk [vmem:[%s269] sm:$0xff] %vm459, %v458
        %s461 = scalar_lea.vmem %s242, 32 [#allocation8]
        %v462 = vld [vmem:[%s461] sm:$0xff]
        %v463 = vld [vmem:[%s461 + $0x8] sm:$0xff]
        %v464 = vld [vmem:[%s461 + $0x10] sm:$0xff]
        %v465 = vld [vmem:[%s461 + $0x18] sm:$0xff]
        %v467 = vsel %vm281, %v462, 0
        %v470 = vsel %vm281, %v463, 0
        %v473 = vsel %vm281, %v464, 0
        %v476 = vsel %vm281, %v465, 0
        %478 = vmatprep.subr.mxu0 0.0
        %479 = vmatpush1.msra.mxu0 %v271
        %480 = vmatprep.subr.mxu0 0.0
        %481 = vmatpush1.msra.mxu0 %v272
        %482 = vmatprep.subr.mxu0 0.0
        %483 = vmatpush1.msra.mxu0 %v273
        %484 = vmatprep.subr.mxu0 0.0
        %485 = vmatpush1.msra.mxu0 %v274
        %486 = vmatprep.subr.mxu0 0.0
        %487 = vmatpush1.msra.mxu0 %v275
        %488 = vmatprep.subr.mxu0 0.0
        %489 = vmatpush1.msra.mxu0 %v276
        %490 = vmatprep.subr.mxu0 0.0
        %491 = vmatpush1.msra.mxu0 0.0
        %492 = vmatprep.subr.mxu0 0.0
        %493 = vmatpush1.msra.mxu0 0.0
        %494 = vmatprep.subr.mxu0 0.0
        %495 = vmatpush1.msra.mxu0 0.0
        %496 = vmatprep.subr.mxu0 0.0
        %497 = vmatpush1.msra.mxu0 0.0
        %498 = vmatprep.subr.mxu0 0.0
        %499 = vmatpush1.msra.mxu0 0.0
        %500 = vmatprep.subr.mxu0 0.0
        %501 = vmatpush1.msra.mxu0 0.0
        %502 = vmatprep.subr.mxu0 0.0
        %503 = vmatpush1.msra.mxu0 0.0
        %504 = vmatprep.subr.mxu0 0.0
        %505 = vmatpush1.msra.mxu0 0.0
        %506 = vmatprep.subr.mxu0 0.0
        %507 = vmatpush1.msra.mxu0 0.0
        %508 = vmatprep.subr.mxu0 0.0
        %509 = vmatpush1.msra.mxu0 0.0
        %510 = vmatprep.subr.mxu0 0.0
        %511 = vmatpush1.msra.mxu0 0.0
        %512 = vmatprep.subr.mxu0 0.0
        %513 = vmatpush1.msra.mxu0 0.0
        %514 = vmatprep.subr.mxu0 0.0
        %515 = vmatpush1.msra.mxu0 0.0
        %516 = vmatprep.subr.mxu0 0.0
        %517 = vmatpush1.msra.mxu0 0.0
        %518 = vmatprep.subr.mxu0 0.0
        %519 = vmatpush1.msra.mxu0 0.0
        %520 = vmatprep.subr.mxu0 0.0
        %521 = vmatpush1.msra.mxu0 0.0
        %522 = vmatprep.subr.mxu0 0.0
        %523 = vmatpush1.msra.mxu0 0.0
        %524 = vmatprep.subr.mxu0 0.0
        %525 = vmatpush1.msra.mxu0 0.0
        %526 = vmatprep.subr.mxu0 0.0
        %527 = vmatpush1.msra.mxu0 0.0
        %528 = vmatprep.subr.mxu0 0.0
        %529 = vmatpush1.msra.mxu0 0.0
        %530 = vmatprep.subr.mxu0 0.0
        %531 = vmatpush1.msra.mxu0 0.0
        %532 = vmatprep.subr.mxu0 0.0
        %533 = vmatpush1.msra.mxu0 0.0
        %534 = vmatprep.subr.mxu0 0.0
        %535 = vmatpush1.msra.mxu0 0.0
        %536 = vmatprep.subr.mxu0 0.0
        %537 = vmatpush1.msra.mxu0 0.0
        %538 = vmatprep.subr.mxu0 0.0
        %539 = vmatpush1.msra.mxu0 0.0
        %540 = vmatprep.subr.mxu0 0.0
        %541 = vmatpush1.msra.mxu0 0.0
        %542 = vmatprep.mubr.f32.mxu0 0.0
        %543 = vmatmul.mubr.f32.gmra.mrb[0].mxu0 %v467
        %v544 = vpop.f32.mrb[0].mxu0
        %v545 = vadd.f32 0.0, %v544
        %v546 = vpop.f32.mrb[0].mxu0
        %547 = vmatprep.mubr.f32.mxu0 0.0
        %548 = vmatmul.mubr.f32.gmra.mrb[0].mxu0 %v470
        %v549 = vpop.f32.mrb[0].mxu0
        %v550 = vadd.f32 0.0, %v549
        %v551 = vpop.f32.mrb[0].mxu0
        %552 = vmatprep.mubr.f32.mxu0 0.0
        %553 = vmatmul.mubr.f32.gmra.mrb[0].mxu0 %v473
        %v554 = vpop.f32.mrb[0].mxu0
        %v555 = vadd.f32 0.0, %v554
        %v556 = vpop.f32.mrb[0].mxu0
        %557 = vmatprep.mubr.f32.mxu0 0.0
        %558 = vmatmul.mubr.f32.gmra.mrb[0].mxu0 %v476
        %v559 = vpop.f32.mrb[0].mxu0
        %v560 = vadd.f32 0.0, %v559
        %v561 = vpop.f32.mrb[0].mxu0
        %562 = vdwg.mxu0
        %563 = vmatprep.subr.mxu0 0.0
        %564 = vmatpush1.msra.mxu0 %v545
        %565 = vmatprep.subr.mxu0 0.0
        %566 = vmatpush1.msra.mxu0 %v550
        %567 = vmatprep.subr.mxu0 0.0
        %568 = vmatpush1.msra.mxu0 %v555
        %569 = vmatprep.subr.mxu0 0.0
        %570 = vmatpush1.msra.mxu0 %v560
        %571 = vmatprep.subr.mxu0 0.0
        %572 = vmatpush1.msra.mxu0 0.0
        %573 = vmatprep.subr.mxu0 0.0
        %574 = vmatpush1.msra.mxu0 0.0
        %575 = vmatprep.subr.mxu0 0.0
        %576 = vmatpush1.msra.mxu0 0.0
        %577 = vmatprep.subr.mxu0 0.0
        %578 = vmatpush1.msra.mxu0 0.0
        %579 = vmatprep.subr.mxu0 0.0
        %580 = vmatpush1.msra.mxu0 0.0
        %581 = vmatprep.subr.mxu0 0.0
        %582 = vmatpush1.msra.mxu0 0.0
        %583 = vmatprep.subr.mxu0 0.0
        %584 = vmatpush1.msra.mxu0 0.0
        %585 = vmatprep.subr.mxu0 0.0
        %586 = vmatpush1.msra.mxu0 0.0
        %587 = vmatprep.subr.mxu0 0.0
        %588 = vmatpush1.msra.mxu0 0.0
        %589 = vmatprep.subr.mxu0 0.0
        %590 = vmatpush1.msra.mxu0 0.0
        %591 = vmatprep.subr.mxu0 0.0
        %592 = vmatpush1.msra.mxu0 0.0
        %593 = vmatprep.subr.mxu0 0.0
        %594 = vmatpush1.msra.mxu0 0.0
        %595 = vmatprep.subr.mxu0 0.0
        %596 = vmatpush1.msra.mxu0 0.0
        %597 = vmatprep.subr.mxu0 0.0
        %598 = vmatpush1.msra.mxu0 0.0
        %599 = vmatprep.subr.mxu0 0.0
        %600 = vmatpush1.msra.mxu0 0.0
        %601 = vmatprep.subr.mxu0 0.0
        %602 = vmatpush1.msra.mxu0 0.0
        %603 = vmatprep.subr.mxu0 0.0
        %604 = vmatpush1.msra.mxu0 0.0
        %605 = vmatprep.subr.mxu0 0.0
        %606 = vmatpush1.msra.mxu0 0.0
        %607 = vmatprep.subr.mxu0 0.0
        %608 = vmatpush1.msra.mxu0 0.0
        %609 = vmatprep.subr.mxu0 0.0
        %610 = vmatpush1.msra.mxu0 0.0
        %611 = vmatprep.subr.mxu0 0.0
        %612 = vmatpush1.msra.mxu0 0.0
        %613 = vmatprep.subr.mxu0 0.0
        %614 = vmatpush1.msra.mxu0 0.0
        %615 = vmatprep.subr.mxu0 0.0
        %616 = vmatpush1.msra.mxu0 0.0
        %617 = vmatprep.subr.mxu0 0.0
        %618 = vmatpush1.msra.mxu0 0.0
        %619 = vmatprep.subr.mxu0 0.0
        %620 = vmatpush1.msra.mxu0 0.0
        %621 = vmatprep.subr.mxu0 0.0
        %622 = vmatpush1.msra.mxu0 0.0
        %623 = vmatprep.subr.mxu0 0.0
        %624 = vmatpush1.msra.mxu0 0.0
        %625 = vmatprep.subr.mxu0 0.0
        %626 = vmatpush1.msra.mxu0 0.0
        %627 = vmatprep.mubr.f32.mxu0 0.0
        %628 = vmatmul.mubr.f32.gmra.mrb[0].mxu0 %v381
        %v629 = vpop.f32.mrb[0].mxu0
        %v630 = vadd.f32 0.0, %v629
        %v631 = vpop.f32.mrb[0].mxu0
        %632 = vdwg.mxu0
        %s633 = sld [smem:[#allocation2 + $0x1]]
        %v634 = vstv %s633
        %v635 = vsub.f32 %v630, %v634
        %s636 = sld [smem:[#allocation6 + $0x1]]
        %v637 = vstv %s636
        %v638 = vmul.f32 %v635, %v637
        %s639 = scalar_lea.vmem %s269, 8 [#allocation9]
        %640 = vst.msk [vmem:[%s639] sm:$0xff] %vm459, %v638
        %s641 = scalar_lea.vmem %s242, 64 [#allocation8]
        %v642 = vld [vmem:[%s641] sm:$0xff]
        %v643 = vld [vmem:[%s641 + $0x8] sm:$0xff]
        %v644 = vld [vmem:[%s641 + $0x10] sm:$0xff]
        %v645 = vld [vmem:[%s641 + $0x18] sm:$0xff]
        %v647 = vsel %vm281, %v642, 0
        %v650 = vsel %vm281, %v643, 0
        %v653 = vsel %vm281, %v644, 0
        %v656 = vsel %vm281, %v645, 0
        %658 = vmatprep.subr.mxu0 0.0
        %659 = vmatpush1.msra.mxu0 %v271
        %660 = vmatprep.subr.mxu0 0.0
        %661 = vmatpush1.msra.mxu0 %v272
        %662 = vmatprep.subr.mxu0 0.0
        %663 = vmatpush1.msra.mxu0 %v273
        %664 = vmatprep.subr.mxu0 0.0
        %665 = vmatpush1.msra.mxu0 %v274
        %666 = vmatprep.subr.mxu0 0.0
        %667 = vmatpush1.msra.mxu0 %v275
        %668 = vmatprep.subr.mxu0 0.0
        %669 = vmatpush1.msra.mxu0 %v276
        %670 = vmatprep.subr.mxu0 0.0
        %671 = vmatpush1.msra.mxu0 0.0
        %672 = vmatprep.subr.mxu0 0.0
        %673 = vmatpush1.msra.mxu0 0.0
        %674 = vmatprep.subr.mxu0 0.0
        %675 = vmatpush1.msra.mxu0 0.0
        %676 = vmatprep.subr.mxu0 0.0
        %677 = vmatpush1.msra.mxu0 0.0
        %678 = vmatprep.subr.mxu0 0.0
        %679 = vmatpush1.msra.mxu0 0.0
        %680 = vmatprep.subr.mxu0 0.0
        %681 = vmatpush1.msra.mxu0 0.0
        %682 = vmatprep.subr.mxu0 0.0
        %683 = vmatpush1.msra.mxu0 0.0
        %684 = vmatprep.subr.mxu0 0.0
        %685 = vmatpush1.msra.mxu0 0.0
        %686 = vmatprep.subr.mxu0 0.0
        %687 = vmatpush1.msra.mxu0 0.0
        %688 = vmatprep.subr.mxu0 0.0
        %689 = vmatpush1.msra.mxu0 0.0
        %690 = vmatprep.subr.mxu0 0.0
        %691 = vmatpush1.msra.mxu0 0.0
        %692 = vmatprep.subr.mxu0 0.0
        %693 = vmatpush1.msra.mxu0 0.0
        %694 = vmatprep.subr.mxu0 0.0
        %695 = vmatpush1.msra.mxu0 0.0
        %696 = vmatprep.subr.mxu0 0.0
        %697 = vmatpush1.msra.mxu0 0.0
        %698 = vmatprep.subr.mxu0 0.0
        %699 = vmatpush1.msra.mxu0 0.0
        %700 = vmatprep.subr.mxu0 0.0
        %701 = vmatpush1.msra.mxu0 0.0
        %702 = vmatprep.subr.mxu0 0.0
        %703 = vmatpush1.msra.mxu0 0.0
        %704 = vmatprep.subr.mxu0 0.0
        %705 = vmatpush1.msra.mxu0 0.0
        %706 = vmatprep.subr.mxu0 0.0
        %707 = vmatpush1.msra.mxu0 0.0
        %708 = vmatprep.subr.mxu0 0.0
        %709 = vmatpush1.msra.mxu0 0.0
        %710 = vmatprep.subr.mxu0 0.0
        %711 = vmatpush1.msra.mxu0 0.0
        %712 = vmatprep.subr.mxu0 0.0
        %713 = vmatpush1.msra.mxu0 0.0
        %714 = vmatprep.subr.mxu0 0.0
        %715 = vmatpush1.msra.mxu0 0.0
        %716 = vmatprep.subr.mxu0 0.0
        %717 = vmatpush1.msra.mxu0 0.0
        %718 = vmatprep.subr.mxu0 0.0
        %719 = vmatpush1.msra.mxu0 0.0
        %720 = vmatprep.subr.mxu0 0.0
        %721 = vmatpush1.msra.mxu0 0.0
        %722 = vmatprep.mubr.f32.mxu0 0.0
        %723 = vmatmul.mubr.f32.gmra.mrb[0].mxu0 %v647
        %v724 = vpop.f32.mrb[0].mxu0
        %v725 = vadd.f32 0.0, %v724
        %v726 = vpop.f32.mrb[0].mxu0
        %727 = vmatprep.mubr.f32.mxu0 0.0
        %728 = vmatmul.mubr.f32.gmra.mrb[0].mxu0 %v650
        %v729 = vpop.f32.mrb[0].mxu0
        %v730 = vadd.f32 0.0, %v729
        %v731 = vpop.f32.mrb[0].mxu0
        %732 = vmatprep.mubr.f32.mxu0 0.0
        %733 = vmatmul.mubr.f32.gmra.mrb[0].mxu0 %v653
        %v734 = vpop.f32.mrb[0].mxu0
        %v735 = vadd.f32 0.0, %v734
        %v736 = vpop.f32.mrb[0].mxu0
        %737 = vmatprep.mubr.f32.mxu0 0.0
        %738 = vmatmul.mubr.f32.gmra.mrb[0].mxu0 %v656
        %v739 = vpop.f32.mrb[0].mxu0
        %v740 = vadd.f32 0.0, %v739
        %v741 = vpop.f32.mrb[0].mxu0
        %742 = vdwg.mxu0
        %743 = vmatprep.subr.mxu0 0.0
        %744 = vmatpush1.msra.mxu0 %v725
        %745 = vmatprep.subr.mxu0 0.0
        %746 = vmatpush1.msra.mxu0 %v730
        %747 = vmatprep.subr.mxu0 0.0
        %748 = vmatpush1.msra.mxu0 %v735
        %749 = vmatprep.subr.mxu0 0.0
        %750 = vmatpush1.msra.mxu0 %v740
        %751 = vmatprep.subr.mxu0 0.0
        %752 = vmatpush1.msra.mxu0 0.0
        %753 = vmatprep.subr.mxu0 0.0
        %754 = vmatpush1.msra.mxu0 0.0
        %755 = vmatprep.subr.mxu0 0.0
        %756 = vmatpush1.msra.mxu0 0.0
        %757 = vmatprep.subr.mxu0 0.0
        %758 = vmatpush1.msra.mxu0 0.0
        %759 = vmatprep.subr.mxu0 0.0
        %760 = vmatpush1.msra.mxu0 0.0
        %761 = vmatprep.subr.mxu0 0.0
        %762 = vmatpush1.msra.mxu0 0.0
        %763 = vmatprep.subr.mxu0 0.0
        %764 = vmatpush1.msra.mxu0 0.0
        %765 = vmatprep.subr.mxu0 0.0
        %766 = vmatpush1.msra.mxu0 0.0
        %767 = vmatprep.subr.mxu0 0.0
        %768 = vmatpush1.msra.mxu0 0.0
        %769 = vmatprep.subr.mxu0 0.0
        %770 = vmatpush1.msra.mxu0 0.0
        %771 = vmatprep.subr.mxu0 0.0
        %772 = vmatpush1.msra.mxu0 0.0
        %773 = vmatprep.subr.mxu0 0.0
        %774 = vmatpush1.msra.mxu0 0.0
        %775 = vmatprep.subr.mxu0 0.0
        %776 = vmatpush1.msra.mxu0 0.0
        %777 = vmatprep.subr.mxu0 0.0
        %778 = vmatpush1.msra.mxu0 0.0
        %779 = vmatprep.subr.mxu0 0.0
        %780 = vmatpush1.msra.mxu0 0.0
        %781 = vmatprep.subr.mxu0 0.0
        %782 = vmatpush1.msra.mxu0 0.0
        %783 = vmatprep.subr.mxu0 0.0
        %784 = vmatpush1.msra.mxu0 0.0
        %785 = vmatprep.subr.mxu0 0.0
        %786 = vmatpush1.msra.mxu0 0.0
        %787 = vmatprep.subr.mxu0 0.0
        %788 = vmatpush1.msra.mxu0 0.0
        %789 = vmatprep.subr.mxu0 0.0
        %790 = vmatpush1.msra.mxu0 0.0
        %791 = vmatprep.subr.mxu0 0.0
        %792 = vmatpush1.msra.mxu0 0.0
        %793 = vmatprep.subr.mxu0 0.0
        %794 = vmatpush1.msra.mxu0 0.0
        %795 = vmatprep.subr.mxu0 0.0
        %796 = vmatpush1.msra.mxu0 0.0
        %797 = vmatprep.subr.mxu0 0.0
        %798 = vmatpush1.msra.mxu0 0.0
        %799 = vmatprep.subr.mxu0 0.0
        %800 = vmatpush1.msra.mxu0 0.0
        %801 = vmatprep.subr.mxu0 0.0
        %802 = vmatpush1.msra.mxu0 0.0
        %803 = vmatprep.subr.mxu0 0.0
        %804 = vmatpush1.msra.mxu0 0.0
        %805 = vmatprep.subr.mxu0 0.0
        %806 = vmatpush1.msra.mxu0 0.0
        %807 = vmatprep.mubr.f32.mxu0 0.0
        %808 = vmatmul.mubr.f32.gmra.mrb[0].mxu0 %v381
        %v809 = vpop.f32.mrb[0].mxu0
        %v810 = vadd.f32 0.0, %v809
        %v811 = vpop.f32.mrb[0].mxu0
        %812 = vdwg.mxu0
        %s813 = sld [smem:[#allocation2 + $0x2]]
        %v814 = vstv %s813
        %v815 = vsub.f32 %v810, %v814
        %s816 = sld [smem:[#allocation6 + $0x2]]
        %v817 = vstv %s816
        %v818 = vmul.f32 %v815, %v817
        %s819 = scalar_lea.vmem %s269, 16 [#allocation9]
        %820 = vst.msk [vmem:[%s819] sm:$0xff] %vm459, %v818
        %s821 = sand.u32 %s142, 1
        %s822 = scalar_lea.sflag [#allocation4], %s821
        %s823 = sand.u32 %s142, 1
        %s824 = smul.addr %s823, 24
        %s825 = scalar_lea.vmem [#allocation9], %s824
        // Predicated region
        $region53: #{tpu_custom_call.1} parent=39 // pred_check
          %p826 = pneg %p152
        $region54: #{tpu_custom_call.1} parent=39 // pred_check_branch
          %828 = sbr.rel (%p826) target = $region56
        $region55: #{tpu_custom_call.1} parent=39 // pred_region
          %s830 = ssub.s32 384, 384
          %831 = vsyncadd %s822, %s830
          %s832 = smul.addr %s24, 3
          %s833 = smul.addr %s832, 128
          %s834 = scalar_lea.hbm %s5, %s833
          %s835 = sshll.u32 %s825, 4
          %s836 = int_to_ptr.vmem [resolvable:$true] %s835
          %841 = dma.vmem_to_hbm [thread:$0]  %s836, 384, %s834, %s822, 128, 128, 8
        $region56: #{tpu_custom_call.1} parent=39 // pred_fallthru
          _
      $region40: #{tpu_custom_call.1} parent=5 // pred_fallthru
        _
      %p842 = scmp.le.s32.totalorder 2, %s19
      // Predicated region
      $region57: #{tpu_custom_call.1} parent=5 // pred_check
        %p843 = pneg %p842
      $region58: #{tpu_custom_call.1} parent=5 // pred_check_branch
        %845 = sbr.rel (%p843) target = $region60
      $region59: #{tpu_custom_call.1} parent=5 // pred_region
        %s846 = ssub.s32 %s19, 2
        // Predicated region
        $region61: #{tpu_custom_call.1} parent=59 // pred_check
          %p847 = pneg %p158
        $region62: #{tpu_custom_call.1} parent=59 // pred_check_branch
          %849 = sbr.rel (%p847) target = $region64
        $region63: #{tpu_custom_call.1} parent=59 // pred_region
          %s850 = sand.u32 %s143, 1
          %s851 = scalar_lea.sflag [#allocation4], %s850
          %s852 = sand.u32 %s143, 1
          %s853 = smul.addr %s852, 24
          %s854 = scalar_lea.vmem [#allocation9], %s853
          %855 = dma.done %s851, 384
        $region64: #{tpu_custom_call.1} parent=59 // pred_fallthru
          _
      $region60: #{tpu_custom_call.1} parent=5 // pred_fallthru
        _
    $region6: #{tpu_custom_call.1} parent=1 // loop_footer
      %s23 = sadd.s32 1, %s19
    $region7: #{tpu_custom_call.1} parent=1 // loop_footer_branch
      %18 = sbr.rel target = $region3
    $region8: #{tpu_custom_call.1} parent=1 // loop_exit
      _
    %856 = vsyncpa [#allocation3], 1
    %s857 = scalar_lea.sflag [#allocation3], 1
    %858 = vsyncpa %s857, 1
    %859 = vsyncpa [#allocation4], 1
    %s860 = scalar_lea.sflag [#allocation4], 1
    %861 = vsyncpa %s860, 1
    %862 = vsyncpa [#allocation5], 1
    %s863 = scalar_lea.sflag [#allocation5], 1
    %864 = vsyncpa %s863, 1
    %865 = vsyncpa [#allocation7], 1

</llo_original>
